<compile_context>
chip_gen: v7x
topology: tpu7x:2x2x1
jax: 0.10.0
libtpu: 0.0.40
codegen_flags: <defaults>
</compile_context>

<pallas_src>
import functools
import math

import jax
import jax.numpy as jnp
from jax.experimental import pallas as pl
from jax.experimental.pallas import tpu as pltpu

EPS = 1e-5
_LANE = 128
_TILE_BYTES = 6 << 20          # per single x/y buffer (x4 with double buffering)
_MAX_FOLD_LANES = 2048         # target width for lane-dense folding
_VMEM_LIMIT = 44 << 20         # explicit scoped-VMEM limit (fits all generations)


def _round_up(a: int, b: int) -> int:
    return (a + b - 1) // b * b


def _sublane(itemsize: int) -> int:
    # native vreg packing: f32 -> 8 rows, bf16/f16 -> 16, int8/fp8 -> 32
    return {4: 8, 2: 16, 1: 32}.get(itemsize, 8)


def _pick_fold(B: int, D: int) -> int:
    """Largest k dividing B with (k*D) % 128 == 0 and k*D <= _MAX_FOLD_LANES."""
    base = _LANE // math.gcd(D, _LANE)   # minimal k making k*D lane-aligned
    best = 1 if D % _LANE == 0 else 0
    m = base
    while m <= B and m * D <= _MAX_FOLD_LANES:
        if B % m == 0:
            best = m
        m += base
    if best == 0:
        # cannot make it lane-aligned within budget; try the minimal alignment
        best = base if (B % base == 0) else 1
    return best


def _scaling_kernel(mult_ref, x_ref, y_ref):
    # mult_ref: resident (1, Df) row; x_ref/y_ref: streamed (tile_b, Df) tiles.
    y_ref[...] = (x_ref[...] * mult_ref[...]).astype(y_ref.dtype)


def scaling_forward(x: jax.Array, log_scale: jax.Array, reverse: bool = False,
                    donate_x: bool = False):
    """NICE Scaling layer.

    Args:
        x: (B, D) input.
        log_scale: (1, D) learnable log-scale parameter.
        reverse: inference mode (divide) if True, sampling mode (multiply) if False.
        donate_x: alias x's buffer for the output (in-place use in a flow stack).

    Returns:
        (y, log_det_J) with y: (B, D), log_det_J: (1,)
    """
    B, D = x.shape
    assert log_scale.shape == (1, D)

    # --- wrapper-side scalar work on the tiny (1, D) parameter ------------
    scale = jnp.exp(log_scale.astype(jnp.float32)) + EPS            # (1, D)
    log_det = jnp.log(scale).sum(axis=1)                            # (1,)
    mult = (1.0 / scale) if reverse else scale                      # (1, D)

    # compute in the input's native low-precision dtype when it has hardware
    # VALU support (bf16/f16); keep f32 otherwise.
    itemsize = jnp.dtype(x.dtype).itemsize
    if jnp.issubdtype(x.dtype, jnp.floating) and itemsize <= 2:
        mult = mult.astype(x.dtype)

    # --- lane-dense folding: (B, D) -> (Bf, Df), Df a wide multiple of 128 --
    fold = _pick_fold(B, D)
    Bf, Df = B // fold, D * fold
    xf = x.reshape(Bf, Df)                       # row-major: free reshape
    multf = jnp.tile(mult, (1, fold)) if fold > 1 else mult

    # --- batch tile: byte-budget driven, dtype-aware sublane multiple,
    #     but keep >= ~4 grid steps so megacore can shard the batch axis.
    sub = _sublane(itemsize)
    budget_rows = max(sub, (_TILE_BYTES // max(1, Df * itemsize)) // sub * sub)
    target_rows = _round_up(max(1, -(-Bf // 4)), sub)
    tile_b = min(budget_rows, target_rows)
    if tile_b >= Bf:
        tile_b = Bf                              # full batch, single step
    grid = (pl.cdiv(Bf, tile_b),)                # ragged tail handled by Pallas

    yf = pl.pallas_call(
        _scaling_kernel,
        out_shape=jax.ShapeDtypeStruct((Bf, Df), x.dtype),
        grid=grid,
        in_specs=[
            pl.BlockSpec((1, Df), lambda i: (0, 0)),        # resident mult row
            pl.BlockSpec((tile_b, Df), lambda i: (i, 0)),   # streamed x tiles
        ],
        out_specs=pl.BlockSpec((tile_b, Df), lambda i: (i, 0)),
        compiler_params=pltpu.CompilerParams(
            dimension_semantics=("parallel",),              # megacore sharding
            vmem_limit_bytes=_VMEM_LIMIT,
        ),
        input_output_aliases=({1: 0} if donate_x else {}),
    )(multf, xf)

    return yf.reshape(B, D), log_det


def _reference(x, log_scale, reverse):
    scale = jnp.exp(log_scale.astype(jnp.float32)) + EPS
    y = x / scale if reverse else x * scale
    return y.astype(x.dtype), jnp.log(scale).sum(axis=1)


if __name__ == "__main__":
    key = jax.random.PRNGKey(0)
    k_x, k_s, k_x2 = jax.random.split(key, 3)

    # Main case: B=8, D=32 (folds batch rows into lanes -> lane-dense width).
    B, D = 8, 32
    x = jax.random.normal(k_x, (B, D), dtype=jnp.float32)
    log_scale = 0.1 * jax.random.normal(k_s, (1, D), dtype=jnp.float32)

    y, ld = scaling_forward(x, log_scale, reverse=False)
    y_rev, ld_rev = scaling_forward(x, log_scale, reverse=True)
    jax.block_until_ready((y, ld, y_rev, ld_rev))

    y_ref, ld_ref = _reference(x, log_scale, reverse=False)
    y_rev_ref, _ = _reference(x, log_scale, reverse=True)

    assert jnp.allclose(y, y_ref, atol=1e-6, rtol=1e-5)
    assert jnp.allclose(y_rev, y_rev_ref, atol=1e-6, rtol=1e-5)
    assert jnp.allclose(ld, ld_ref, atol=1e-6, rtol=1e-5)
    assert jnp.allclose(ld_rev, ld_ref, atol=1e-6, rtol=1e-5)

    # Secondary case: B=10 is not divisible by the fold factor -> no folding,
    # ragged batch grid (no padding / slicing) with masked last-block writeback.
    B2 = 10
    x2 = jax.random.normal(k_x2, (B2, D), dtype=jnp.float32)
    y2, ld2 = scaling_forward(x2, log_scale, reverse=False)
    jax.block_until_ready((y2, ld2))
    y2_ref, ld2_ref = _reference(x2, log_scale, reverse=False)
    assert jnp.allclose(y2, y2_ref, atol=1e-6, rtol=1e-5)
    assert jnp.allclose(ld2, ld2_ref, atol=1e-6, rtol=1e-5)

    print("KERNEL_OK")
</pallas_src>

<mosaic_0001>
module attributes {stable_mosaic.version = 11 : i64} {
  func.func @_scaling_kernel(%arg0: i32, %arg1: memref<1x256xf32, #tpu.memory_space<vmem>>, %arg2: memref<1x256xf32, #tpu.memory_space<vmem>>, %arg3: memref<1x256xf32, #tpu.memory_space<vmem>>) attributes {dimension_semantics = [#tpu.dimension_semantics<parallel>], iteration_bounds = array<i64: 1>, scalar_prefetch = 0 : i64, scratch_operands = 0 : i64, tpu.core_type = #tpu.core_type<tc>, window_params = [{pipeline_mode = #tpu.pipeline_mode<synchronous>, transform_indices = @transform_0, window_bounds = array<i64: 1, 256>}, {transform_indices = @transform_1, window_bounds = array<i64: 1, 256>}, {transform_indices = @transform_2, window_bounds = array<i64: 1, 256>}]} {
    %c0 = arith.constant 0 : index
    %c0_0 = arith.constant 0 : index
    %0 = vector.load %arg2[%c0, %c0_0] : memref<1x256xf32, #tpu.memory_space<vmem>>, vector<1x256xf32>
    %c0_1 = arith.constant 0 : index
    %c0_2 = arith.constant 0 : index
    %1 = vector.load %arg1[%c0_1, %c0_2] : memref<1x256xf32, #tpu.memory_space<vmem>>, vector<1x256xf32>
    %2 = arith.mulf %0, %1 : vector<1x256xf32>
    %c0_3 = arith.constant 0 : index
    %c0_4 = arith.constant 0 : index
    %3 = vector.load %arg3[%c0_3, %c0_4] : memref<1x256xf32, #tpu.memory_space<vmem>>, vector<1x256xf32>
    tpu.vector_store %arg3[%c0_3, %c0_4], %2 {strides = array<i32>} : memref<1x256xf32, #tpu.memory_space<vmem>>, vector<1x256xf32>,
    return
  }
  func.func @transform_0(%arg0: i32) -> (i32, i32) {
    %c0_i32 = arith.constant 0 : i32
    %c0_i32_0 = arith.constant 0 : i32
    %c0_i32_1 = arith.constant 0 : i32
    return %c0_i32, %c0_i32_0 : i32, i32
  }
  func.func @transform_1(%arg0: i32) -> (i32, i32) {
    %c0_i32 = arith.constant 0 : i32
    %c0_i32_0 = arith.constant 0 : i32
    return %arg0, %c0_i32 : i32, i32
  }
  func.func @transform_2(%arg0: i32) -> (i32, i32) {
    %c0_i32 = arith.constant 0 : i32
    %c0_i32_0 = arith.constant 0 : i32
    return %arg0, %c0_i32 : i32, i32
  }
}

</mosaic_0001>

<llo_original>
// kernel: tpu_custom_call.1
$region0: #{tpu_custom_call.1}
  #allocation0 [shape = 'u32[]', space=smem, size = 0x4, offset = 0x4, fixed_abs, tag = 'smem constant byte address 0x4 - core index']
  #allocation1 [shape = 'u32[144,128]{1,0:T(1,128)}', space=vmem, size = 0x12000, scoped, tag = 'internal scratch']
  %s0 = inlined_call_operand.hbm [shape: f32[1,256], index: 0, kind: input, shape index: {}]
  %s1 = inlined_call_operand.vmem [shape: f32[1,256], index: 1, kind: input, shape index: {}]
  %s2 = inlined_call_operand.hbm [shape: f32[1,256], index: 2, kind: output, shape index: {}]
  %s3 = sld [smem:[#allocation0]]
  $region22: #{tpu_custom_call.1} parent=0
    _
  %s5 = ssub.s32 1, %s3
  %s6 = scalar_select 0, %s5, %s3
  $region1: #{tpu_custom_call.1} parent=0
    #allocation2 [shape = 'u8[1024]{0}', space=vmem, size = 0x400, scoped, tag = 'input window, operand 0, single buffered']
    #allocation3 [shape = 's32[1]{0}', space=sflag, size = 0x4, scoped, tag = 'scoped memory for tpu_custom_call.1']
    #allocation4 [shape = 's32[1]{0}', space=sflag, size = 0x4, scoped, tag = 'scoped memory for tpu_custom_call.1']
    #allocation5 [shape = 'u8[1024]{0}', space=vmem, size = 0x400, scoped, tag = 'output window, operand 0, single buffered']
    %7 = vsyncpa [#allocation3], 0
    %8 = vsyncpa [#allocation4], 0
    // Predicated region
    $region2: #{tpu_custom_call.1} parent=1 // pred_check
      _
    $region3: #{tpu_custom_call.1} parent=1 // pred_check_branch
      %10 = sbr.rel (0) target = $region5
    $region4: #{tpu_custom_call.1} parent=1 // pred_region
      %s12 = ssub.s32 32, 32
      %13 = vsyncadd [#allocation3], %s12
      %s15 = sshll.u32 [#allocation2], 4
      %s16 = int_to_ptr.vmem [resolvable:$true] %s15
      %18 = dma.hbm_to_vmem [thread:$0]  %s0, 32, %s16, [#allocation3]
    $region5: #{tpu_custom_call.1} parent=1 // pred_fallthru
      _
    // Predicated region
    $region6: #{tpu_custom_call.1} parent=1 // pred_check
      _
    $region7: #{tpu_custom_call.1} parent=1 // pred_check_branch
      %20 = sbr.rel (0) target = $region9
    $region8: #{tpu_custom_call.1} parent=1 // pred_region
      _
    $region9: #{tpu_custom_call.1} parent=1 // pred_fallthru
      _
    // Predicated region
    $region10: #{tpu_custom_call.1} parent=1 // pred_check
      _
    $region11: #{tpu_custom_call.1} parent=1 // pred_check_branch
      %22 = sbr.rel (0) target = $region13
    $region12: #{tpu_custom_call.1} parent=1 // pred_region
      %23 = dma.done [#allocation3], 32
    $region13: #{tpu_custom_call.1} parent=1 // pred_fallthru
      _
    %v24 = vld [vmem:[%s1] sm:$0x3]
    %v25 = vld [vmem:[#allocation2] sm:$0x3]
    %v26 = vmul.f32 %v24, %v25
    %v27 = vlaneseq
    %vm28 = vcmp.ge.s32.totalorder %v27, 0
    %vm29 = vcmp.lt.s32.totalorder %v27, 256
    %vm30 = vmand %vm28, %vm29
    %31 = vst.msk [vmem:[#allocation5] sm:$0x3] %vm30, %v26
    // Predicated region
    $region14: #{tpu_custom_call.1} parent=1 // pred_check
      _
    $region15: #{tpu_custom_call.1} parent=1 // pred_check_branch
      %33 = sbr.rel (0) target = $region17
    $region16: #{tpu_custom_call.1} parent=1 // pred_region
      %s35 = ssub.s32 32, 32
      %36 = vsyncadd [#allocation4], %s35
      %s38 = sshll.u32 [#allocation5], 4
      %s39 = int_to_ptr.vmem [resolvable:$true] %s38
      %41 = dma.vmem_to_hbm [thread:$0]  %s39, 32, %s2, [#allocation4]
    $region17: #{tpu_custom_call.1} parent=1 // pred_fallthru
      _
    // Predicated region
    $region18: #{tpu_custom_call.1} parent=1 // pred_check
      _
    $region19: #{tpu_custom_call.1} parent=1 // pred_check_branch
      %43 = sbr.rel (0) target = $region21
    $region20: #{tpu_custom_call.1} parent=1 // pred_region
      %44 = dma.done [#allocation4], 32
    $region21: #{tpu_custom_call.1} parent=1 // pred_fallthru
      _
    %45 = vsyncpa [#allocation3], 1
    %46 = vsyncpa [#allocation4], 1

</llo_original>
